<compile_context>
chip_gen: v5e
topology: v5e:2x2
jax: 0.10.0
libtpu: 0.0.40
codegen_flags: <defaults>
</compile_context>

<pallas_src>
import functools

import jax
import jax.numpy as jnp
from jax.experimental import pallas as pl
from jax.experimental.pallas import tpu as pltpu


def dueling_dqn_kernel(x_ref, w1b_ref, w2b_ref, whb_ref, q_ref):
    S = x_ref.shape[1]            # state_dim
    H = w2b_ref.shape[1]          # hidden_dim

    x = x_ref[...]                                  # (TB, S)

    # ---- fc1 + relu -------------------------------------------------------
    w1b = w1b_ref[...]                              # (S+1, H): rows [W1; b1]
    w1, b1 = w1b[:S, :], w1b[S:, :]
    if S <= 16:
        # state_dim is tiny: do S broadcast FMAs on the VPU instead of an MXU
        # matmul whose systolic fill/drain dwarfs the 4 accumulation steps.
        h1 = x[:, 0:1] * w1[0:1, :] + b1            # (TB, H)
        for k in range(1, S):
            h1 = h1 + x[:, k:k + 1] * w1[k:k + 1, :]
    else:
        h1 = jnp.dot(x, w1, preferred_element_type=jnp.float32) + b1
    h1 = jnp.maximum(h1, 0.0)

    # ---- fc2 + relu (MXU) -------------------------------------------------
    w2b = w2b_ref[...]                              # (H+1, H): rows [W2; b2]
    h2 = jnp.dot(h1, w2b[:H, :], preferred_element_type=jnp.float32) + w2b[H:, :]
    h2 = jnp.maximum(h2, 0.0)                       # (TB, H)

    # ---- fused dueling heads: one (TB,H)@(H,1+A) matmul ---------------------
    whb = whb_ref[...]                              # (H+1, 1+A): [[Wv Wa]; [bv ba]]
    va = jnp.dot(h2, whb[:H, :], preferred_element_type=jnp.float32) + whb[H:, :]
    v = va[:, :1]                                   # (TB, 1)
    a = va[:, 1:]                                   # (TB, A)

    # q = v + (a - mean(a, axis=1, keepdims=True))
    # (output last dim A < 128 lanes -> masked store; negligible at A=2)
    q_ref[...] = v + (a - jnp.mean(a, axis=1, keepdims=True))


def pack_params(params):
    """Fold biases into weights and fuse the two heads: 8 arrays -> 3."""
    w1, b1, w2, b2, wv, bv, wa, ba = params
    w1b = jnp.concatenate([w1, b1], axis=0)                        # (S+1, H)
    w2b = jnp.concatenate([w2, b2], axis=0)                        # (H+1, H)
    whb = jnp.concatenate(
        [jnp.concatenate([wv, wa], axis=1),                        # (H, 1+A)
         jnp.concatenate([bv, ba], axis=1)], axis=0)               # (H+1, 1+A)
    return w1b, w2b, whb


@functools.partial(jax.jit, static_argnames=("tile_b",))
def dueling_dqn_forward(x, packed, *, tile_b=128):
    w1b, w2b, whb = packed
    B, S = x.shape
    A = whb.shape[1] - 1

    tb = min(tile_b, B)
    b_pad = pl.cdiv(B, tb) * tb
    if b_pad != B:                       # pad batch to a multiple of the tile
        x = jnp.pad(x, ((0, b_pad - B), (0, 0)))

    q = pl.pallas_call(
        dueling_dqn_kernel,
        out_shape=jax.ShapeDtypeStruct((b_pad, A), jnp.float32),
        grid=(b_pad // tb,),
        in_specs=[
            pl.BlockSpec((tb, S), lambda i: (i, 0)),
            # weights: identical block index every grid step -> VMEM-resident
            pl.BlockSpec(w1b.shape, lambda i: (0, 0)),
            pl.BlockSpec(w2b.shape, lambda i: (0, 0)),
            pl.BlockSpec(whb.shape, lambda i: (0, 0)),
        ],
        out_specs=pl.BlockSpec((tb, A), lambda i: (i, 0)),
        compiler_params=pltpu.CompilerParams(
            dimension_semantics=("parallel",)),  # batch tiles independent
    )(x, w1b, w2b, whb)
    return q[:B]


def init_params(key, state_dim, action_dim, hidden_dim):
    ks = jax.random.split(key, 8)

    def lin(kw, kb, fan_in, fan_out):
        bound = 1.0 / jnp.sqrt(fan_in)
        w = jax.random.uniform(kw, (fan_in, fan_out), jnp.float32, -bound, bound)
        b = jax.random.uniform(kb, (1, fan_out), jnp.float32, -bound, bound)
        return w, b

    w1, b1 = lin(ks[0], ks[1], state_dim, hidden_dim)
    w2, b2 = lin(ks[2], ks[3], hidden_dim, hidden_dim)
    wv, bv = lin(ks[4], ks[5], hidden_dim, 1)
    wa, ba = lin(ks[6], ks[7], hidden_dim, action_dim)
    return (w1, b1, w2, b2, wv, bv, wa, ba)


def reference_forward(x, params):
    w1, b1, w2, b2, wv, bv, wa, ba = params
    h1 = jnp.maximum(x @ w1 + b1, 0.0)
    h2 = jnp.maximum(h1 @ w2 + b2, 0.0)
    v = h2 @ wv + bv
    a = h2 @ wa + ba
    return v + (a - jnp.mean(a, axis=1, keepdims=True))


if __name__ == "__main__":
    state_dim = 4      # CartPole-v0 observation dim
    action_dim = 2     # CartPole-v0 action dim
    hidden_dim = 128

    key = jax.random.PRNGKey(0)
    kx, kp, kx2 = jax.random.split(key, 3)
    params = init_params(kp, state_dim, action_dim, hidden_dim)
    packed = pack_params(params)

    # Small batch: single grid step (latency path).
    x = jax.random.normal(kx, (8, state_dim), dtype=jnp.float32)
    q = jax.block_until_ready(dueling_dqn_forward(x, packed))
    q_ref = reference_forward(x, params)
    assert q.shape == (8, action_dim)
    assert jnp.allclose(q, q_ref, atol=1e-5, rtol=1e-5)

    # Larger batch: exercises the weight-resident batch grid + tail padding.
    x2 = jax.random.normal(kx2, (200, state_dim), dtype=jnp.float32)
    q2 = jax.block_until_ready(dueling_dqn_forward(x2, packed))
    q2_ref = reference_forward(x2, params)
    assert q2.shape == (200, action_dim)
    assert jnp.allclose(q2, q2_ref, atol=1e-5, rtol=1e-5)

    print("KERNEL_OK")
</pallas_src>

<mosaic_0001>
module attributes {stable_mosaic.version = 11 : i64} {
  func.func @dueling_dqn_kernel(%arg0: i32, %arg1: memref<8x4xf32, #tpu.memory_space<vmem>>, %arg2: memref<5x128xf32, #tpu.memory_space<vmem>>, %arg3: memref<129x128xf32, #tpu.memory_space<vmem>>, %arg4: memref<129x3xf32, #tpu.memory_space<vmem>>, %arg5: memref<8x2xf32, #tpu.memory_space<vmem>>) attributes {dimension_semantics = [#tpu.dimension_semantics<parallel>], iteration_bounds = array<i64: 1>, scalar_prefetch = 0 : i64, scratch_operands = 0 : i64, tpu.core_type = #tpu.core_type<tc>, window_params = [{transform_indices = @transform_0, window_bounds = array<i64: 8, 4>}, {pipeline_mode = #tpu.pipeline_mode<synchronous>, transform_indices = @transform_1, window_bounds = array<i64: 5, 128>}, {pipeline_mode = #tpu.pipeline_mode<synchronous>, transform_indices = @transform_2, window_bounds = array<i64: 129, 128>}, {pipeline_mode = #tpu.pipeline_mode<synchronous>, transform_indices = @transform_3, window_bounds = array<i64: 129, 3>}, {transform_indices = @transform_4, window_bounds = array<i64: 8, 2>}]} {
    %c0 = arith.constant 0 : index
    %c0_0 = arith.constant 0 : index
    %0 = vector.load %arg1[%c0, %c0_0] : memref<8x4xf32, #tpu.memory_space<vmem>>, vector<8x4xf32>
    %c0_1 = arith.constant 0 : index
    %c0_2 = arith.constant 0 : index
    %1 = vector.load %arg2[%c0_1, %c0_2] : memref<5x128xf32, #tpu.memory_space<vmem>>, vector<5x128xf32>
    %2 = vector.extract_strided_slice %1 {offsets = [0, 0], sizes = [4, 128], strides = [1, 1]} : vector<5x128xf32> to vector<4x128xf32>
    %3 = vector.extract_strided_slice %1 {offsets = [4, 0], sizes = [1, 128], strides = [1, 1]} : vector<5x128xf32> to vector<1x128xf32>
    %4 = vector.extract_strided_slice %0 {offsets = [0, 0], sizes = [8, 1], strides = [1, 1]} : vector<8x4xf32> to vector<8x1xf32>
    %5 = vector.extract_strided_slice %2 {offsets = [0, 0], sizes = [1, 128], strides = [1, 1]} : vector<4x128xf32> to vector<1x128xf32>
    %6 = vector.broadcast %4 : vector<8x1xf32> to vector<8x128xf32>
    %7 = vector.broadcast %5 : vector<1x128xf32> to vector<8x128xf32>
    %8 = arith.mulf %6, %7 : vector<8x128xf32>
    %9 = vector.broadcast %3 : vector<1x128xf32> to vector<8x128xf32>
    %10 = arith.addf %8, %9 : vector<8x128xf32>
    %11 = vector.extract_strided_slice %0 {offsets = [0, 1], sizes = [8, 1], strides = [1, 1]} : vector<8x4xf32> to vector<8x1xf32>
    %12 = vector.extract_strided_slice %2 {offsets = [1, 0], sizes = [1, 128], strides = [1, 1]} : vector<4x128xf32> to vector<1x128xf32>
    %13 = vector.broadcast %11 : vector<8x1xf32> to vector<8x128xf32>
    %14 = vector.broadcast %12 : vector<1x128xf32> to vector<8x128xf32>
    %15 = arith.mulf %13, %14 : vector<8x128xf32>
    %16 = arith.addf %10, %15 : vector<8x128xf32>
    %17 = vector.extract_strided_slice %0 {offsets = [0, 2], sizes = [8, 1], strides = [1, 1]} : vector<8x4xf32> to vector<8x1xf32>
    %18 = vector.extract_strided_slice %2 {offsets = [2, 0], sizes = [1, 128], strides = [1, 1]} : vector<4x128xf32> to vector<1x128xf32>
    %19 = vector.broadcast %17 : vector<8x1xf32> to vector<8x128xf32>
    %20 = vector.broadcast %18 : vector<1x128xf32> to vector<8x128xf32>
    %21 = arith.mulf %19, %20 : vector<8x128xf32>
    %22 = arith.addf %16, %21 : vector<8x128xf32>
    %23 = vector.extract_strided_slice %0 {offsets = [0, 3], sizes = [8, 1], strides = [1, 1]} : vector<8x4xf32> to vector<8x1xf32>
    %24 = vector.extract_strided_slice %2 {offsets = [3, 0], sizes = [1, 128], strides = [1, 1]} : vector<4x128xf32> to vector<1x128xf32>
    %25 = vector.broadcast %23 : vector<8x1xf32> to vector<8x128xf32>
    %26 = vector.broadcast %24 : vector<1x128xf32> to vector<8x128xf32>
    %27 = arith.mulf %25, %26 : vector<8x128xf32>
    %28 = arith.addf %22, %27 : vector<8x128xf32>
    %cst = arith.constant 0.000000e+00 : f32
    %29 = vector.broadcast %cst : f32 to vector<8x128xf32>
    %30 = arith.maximumf %28, %29 : vector<8x128xf32>
    %c0_3 = arith.constant 0 : index
    %c0_4 = arith.constant 0 : index
    %31 = vector.load %arg3[%c0_3, %c0_4] : memref<129x128xf32, #tpu.memory_space<vmem>>, vector<129x128xf32>
    %32 = vector.extract_strided_slice %31 {offsets = [0, 0], sizes = [128, 128], strides = [1, 1]} : vector<129x128xf32> to vector<128x128xf32>
    %cst_5 = arith.constant dense<0.000000e+00> : vector<8x128xf32>
    %33 = tpu.matmul %30, %32, %cst_5 {dimension_numbers = #tpu.dot_dimension_numbers<[1], [0], [0], [1], [0, 0, 1, 1], [], []>} : vector<8x128xf32>, vector<128x128xf32>, vector<8x128xf32> -> vector<8x128xf32>
    %34 = vector.extract_strided_slice %31 {offsets = [128, 0], sizes = [1, 128], strides = [1, 1]} : vector<129x128xf32> to vector<1x128xf32>
    %35 = vector.broadcast %34 : vector<1x128xf32> to vector<8x128xf32>
    %36 = arith.addf %33, %35 : vector<8x128xf32>
    %cst_6 = arith.constant 0.000000e+00 : f32
    %37 = vector.broadcast %cst_6 : f32 to vector<8x128xf32>
    %38 = arith.maximumf %36, %37 : vector<8x128xf32>
    %c0_7 = arith.constant 0 : index
    %c0_8 = arith.constant 0 : index
    %39 = vector.load %arg4[%c0_7, %c0_8] : memref<129x3xf32, #tpu.memory_space<vmem>>, vector<129x3xf32>
    %40 = vector.extract_strided_slice %39 {offsets = [0, 0], sizes = [128, 3], strides = [1, 1]} : vector<129x3xf32> to vector<128x3xf32>
    %cst_9 = arith.constant dense<0.000000e+00> : vector<8x3xf32>
    %41 = tpu.matmul %38, %40, %cst_9 {dimension_numbers = #tpu.dot_dimension_numbers<[1], [0], [0], [1], [0, 0, 1, 1], [], []>} : vector<8x128xf32>, vector<128x3xf32>, vector<8x3xf32> -> vector<8x3xf32>
    %42 = vector.extract_strided_slice %39 {offsets = [128, 0], sizes = [1, 3], strides = [1, 1]} : vector<129x3xf32> to vector<1x3xf32>
    %43 = vector.broadcast %42 : vector<1x3xf32> to vector<8x3xf32>
    %44 = arith.addf %41, %43 : vector<8x3xf32>
    %45 = vector.extract_strided_slice %44 {offsets = [0, 0], sizes = [8, 1], strides = [1, 1]} : vector<8x3xf32> to vector<8x1xf32>
    %46 = vector.extract_strided_slice %44 {offsets = [0, 1], sizes = [8, 2], strides = [1, 1]} : vector<8x3xf32> to vector<8x2xf32>
    %cst_10 = arith.constant dense<0.000000e+00> : vector<8xf32>
    %47 = vector.multi_reduction <add>, %46, %cst_10 [1] : vector<8x2xf32> to vector<8xf32>
    %48 = vector.shape_cast %47 : vector<8xf32> to vector<8x1xf32>
    %cst_11 = arith.constant 2.000000e+00 : f32
    %49 = vector.broadcast %cst_11 : f32 to vector<8x1xf32>
    %50 = arith.divf %48, %49 : vector<8x1xf32>
    %51 = vector.broadcast %50 : vector<8x1xf32> to vector<8x2xf32>
    %52 = arith.subf %46, %51 : vector<8x2xf32>
    %53 = vector.broadcast %45 : vector<8x1xf32> to vector<8x2xf32>
    %54 = arith.addf %53, %52 : vector<8x2xf32>
    %c0_12 = arith.constant 0 : index
    %c0_13 = arith.constant 0 : index
    %55 = vector.load %arg5[%c0_12, %c0_13] : memref<8x2xf32, #tpu.memory_space<vmem>>, vector<8x2xf32>
    tpu.vector_store %arg5[%c0_12, %c0_13], %54 {strides = array<i32>} : memref<8x2xf32, #tpu.memory_space<vmem>>, vector<8x2xf32>,
    return
  }
  func.func @transform_0(%arg0: i32) -> (i32, i32) {
    %c0_i32 = arith.constant 0 : i32
    %c0_i32_0 = arith.constant 0 : i32
    return %arg0, %c0_i32 : i32, i32
  }
  func.func @transform_1(%arg0: i32) -> (i32, i32) {
    %c0_i32 = arith.constant 0 : i32
    %c0_i32_0 = arith.constant 0 : i32
    %c0_i32_1 = arith.constant 0 : i32
    return %c0_i32, %c0_i32_0 : i32, i32
  }
  func.func @transform_2(%arg0: i32) -> (i32, i32) {
    %c0_i32 = arith.constant 0 : i32
    %c0_i32_0 = arith.constant 0 : i32
    %c0_i32_1 = arith.constant 0 : i32
    return %c0_i32, %c0_i32_0 : i32, i32
  }
  func.func @transform_3(%arg0: i32) -> (i32, i32) {
    %c0_i32 = arith.constant 0 : i32
    %c0_i32_0 = arith.constant 0 : i32
    %c0_i32_1 = arith.constant 0 : i32
    return %c0_i32, %c0_i32_0 : i32, i32
  }
  func.func @transform_4(%arg0: i32) -> (i32, i32) {
    %c0_i32 = arith.constant 0 : i32
    %c0_i32_0 = arith.constant 0 : i32
    return %arg0, %c0_i32 : i32, i32
  }
}

</mosaic_0001>

<llo_original>
// kernel: dueling_dqn_forward.1
$region0: #{dueling_dqn_forward.1}
  #allocation0 [shape = 'u32[]', space=smem, size = 0x4, offset = 0x4, fixed_abs, tag = 'smem constant byte address 0x4 - core index']
  #allocation1 [shape = 'u32[72,128]{1,0:T(1,128)}', space=vmem, size = 0x9000, scoped, tag = 'internal scratch']
  %s0 = inlined_call_operand.vmem [shape: f32[8,4], index: 0, kind: input, shape index: {}]
  %s1 = inlined_call_operand.vmem [shape: f32[5,128], index: 1, kind: input, shape index: {}]
  %s2 = inlined_call_operand.vmem [shape: f32[129,128], index: 2, kind: input, shape index: {}]
  %s3 = inlined_call_operand.vmem [shape: f32[129,3], index: 3, kind: input, shape index: {}]
  %s4 = inlined_call_operand.vmem [shape: f32[8,2], index: 4, kind: output, shape index: {}]
  %s5 = sld [smem:[#allocation0]]
  $region26: #{dueling_dqn_forward.1} parent=0
    _
  %s7 = ssub.s32 1, %s5
  %s8 = scalar_select 0, %s7, %s5
  // Predicated region
  $region2: #{dueling_dqn_forward.1} parent=0 // pred_check
    _
  $region3: #{dueling_dqn_forward.1} parent=0 // pred_check_branch
    %10 = sbr.rel (0) target = $region5
  $region4: #{dueling_dqn_forward.1} parent=0 // pred_region
    _
  $region5: #{dueling_dqn_forward.1} parent=0 // pred_fallthru
    _
  // Predicated region
  $region6: #{dueling_dqn_forward.1} parent=0 // pred_check
    _
  $region7: #{dueling_dqn_forward.1} parent=0 // pred_check_branch
    %12 = sbr.rel (0) target = $region9
  $region8: #{dueling_dqn_forward.1} parent=0 // pred_region
    _
  $region9: #{dueling_dqn_forward.1} parent=0 // pred_fallthru
    _
  // Predicated region
  $region10: #{dueling_dqn_forward.1} parent=0 // pred_check
    _
  $region11: #{dueling_dqn_forward.1} parent=0 // pred_check_branch
    %14 = sbr.rel (0) target = $region13
  $region12: #{dueling_dqn_forward.1} parent=0 // pred_region
    _
  $region13: #{dueling_dqn_forward.1} parent=0 // pred_fallthru
    _
  // Predicated region
  $region14: #{dueling_dqn_forward.1} parent=0 // pred_check
    _
  $region15: #{dueling_dqn_forward.1} parent=0 // pred_check_branch
    %16 = sbr.rel (0) target = $region17
  $region16: #{dueling_dqn_forward.1} parent=0 // pred_region
    _
  $region17: #{dueling_dqn_forward.1} parent=0 // pred_fallthru
    _
  %v17 = vld [vmem:[%s0] sm:$0xff]
  %v18 = vld [vmem:[%s1] sm:$0x1f]
  %20 = vset.pattern.permute.xlu0 0
  %21 = vperm.xlu0 %20, %v17
  %v22 = vpop.permute.xlu0 %21
  %v24 = vperm.slane %v18, 0
  %v25 = vmul.f32 %v22, %v24
  %v26 = vperm.slane %v18, 4
  %v27 = vadd.f32 %v25, %v26
  %28 = vset.pattern.permute.xlu0 1
  %29 = vperm.xlu0 %28, %v17
  %v30 = vpop.permute.xlu0 %29
  %v32 = vperm.slane %v18, 1
  %v33 = vmul.f32 %v30, %v32
  %v34 = vadd.f32 %v27, %v33
  %35 = vset.pattern.permute.xlu0 2
  %36 = vperm.xlu0 %35, %v17
  %v37 = vpop.permute.xlu0 %36
  %v39 = vperm.slane %v18, 2
  %v40 = vmul.f32 %v37, %v39
  %v41 = vadd.f32 %v34, %v40
  %42 = vset.pattern.permute.xlu0 3
  %43 = vperm.xlu0 %42, %v17
  %v44 = vpop.permute.xlu0 %43
  %v46 = vperm.slane %v18, 3
  %v47 = vmul.f32 %v44, %v46
  %v48 = vadd.f32 %v41, %v47
  %v49 = vmax.f32 %v48, 0.0
  %v50 = vld [vmem:[%s2] sm:$0xff]
  %v51 = vld [vmem:[%s2 + $0x8] sm:$0xff]
  %v52 = vld [vmem:[%s2 + $0x10] sm:$0xff]
  %v53 = vld [vmem:[%s2 + $0x18] sm:$0xff]
  %v54 = vld [vmem:[%s2 + $0x20] sm:$0xff]
  %v55 = vld [vmem:[%s2 + $0x28] sm:$0xff]
  %v56 = vld [vmem:[%s2 + $0x30] sm:$0xff]
  %v57 = vld [vmem:[%s2 + $0x38] sm:$0xff]
  %v58 = vld [vmem:[%s2 + $0x40] sm:$0xff]
  %v59 = vld [vmem:[%s2 + $0x48] sm:$0xff]
  %v60 = vld [vmem:[%s2 + $0x50] sm:$0xff]
  %v61 = vld [vmem:[%s2 + $0x58] sm:$0xff]
  %v62 = vld [vmem:[%s2 + $0x60] sm:$0xff]
  %v63 = vld [vmem:[%s2 + $0x68] sm:$0xff]
  %v64 = vld [vmem:[%s2 + $0x70] sm:$0xff]
  %v65 = vld [vmem:[%s2 + $0x78] sm:$0xff]
  %v66 = vld [vmem:[%s2 + $0x80] sm:$0x1]
  %v67 = vperm.slane %v66, 0
  %68 = vmatpush.msra.mxu0 %v65
  %69 = vmatpush.msra.mxu0 %v64
  %70 = vmatpush.msra.mxu0 %v63
  %71 = vmatpush.msra.mxu0 %v62
  %72 = vmatpush.msra.mxu0 %v61
  %73 = vmatpush.msra.mxu0 %v60
  %74 = vmatpush.msra.mxu0 %v59
  %75 = vmatpush.msra.mxu0 %v58
  %76 = vmatpush.msra.mxu0 %v57
  %77 = vmatpush.msra.mxu0 %v56
  %78 = vmatpush.msra.mxu0 %v55
  %79 = vmatpush.msra.mxu0 %v54
  %80 = vmatpush.msra.mxu0 %v53
  %81 = vmatpush.msra.mxu0 %v52
  %82 = vmatpush.msra.mxu0 %v51
  %83 = vmatpush.msra.mxu0 %v50
  %84 = vmatmul.f32.gmra.mxu0 %v49
  %v85 = vpop.f32.mrf.mxu0
  %v86 = vadd.f32 %v67, %v85
  %87 = vdwg.mxu0
  %v88 = vmax.f32 %v86, 0.0
  %v89 = vld [vmem:[%s3] sm:$0xff]
  %v90 = vld [vmem:[%s3 + $0x8] sm:$0xff]
  %v91 = vld [vmem:[%s3 + $0x10] sm:$0xff]
  %v92 = vld [vmem:[%s3 + $0x18] sm:$0xff]
  %v93 = vld [vmem:[%s3 + $0x20] sm:$0xff]
  %v94 = vld [vmem:[%s3 + $0x28] sm:$0xff]
  %v95 = vld [vmem:[%s3 + $0x30] sm:$0xff]
  %v96 = vld [vmem:[%s3 + $0x38] sm:$0xff]
  %v97 = vld [vmem:[%s3 + $0x40] sm:$0xff]
  %v98 = vld [vmem:[%s3 + $0x48] sm:$0xff]
  %v99 = vld [vmem:[%s3 + $0x50] sm:$0xff]
  %v100 = vld [vmem:[%s3 + $0x58] sm:$0xff]
  %v101 = vld [vmem:[%s3 + $0x60] sm:$0xff]
  %v102 = vld [vmem:[%s3 + $0x68] sm:$0xff]
  %v103 = vld [vmem:[%s3 + $0x70] sm:$0xff]
  %v104 = vld [vmem:[%s3 + $0x78] sm:$0xff]
  %v105 = vld [vmem:[%s3 + $0x80] sm:$0x1]
  %v106 = vperm.slane %v105, 0
  %107 = vmatpush.msra.mxu0 %v104
  %108 = vmatpush.msra.mxu0 %v103
  %109 = vmatpush.msra.mxu0 %v102
  %110 = vmatpush.msra.mxu0 %v101
  %111 = vmatpush.msra.mxu0 %v100
  %112 = vmatpush.msra.mxu0 %v99
  %113 = vmatpush.msra.mxu0 %v98
  %114 = vmatpush.msra.mxu0 %v97
  %115 = vmatpush.msra.mxu0 %v96
  %116 = vmatpush.msra.mxu0 %v95
  %117 = vmatpush.msra.mxu0 %v94
  %118 = vmatpush.msra.mxu0 %v93
  %119 = vmatpush.msra.mxu0 %v92
  %120 = vmatpush.msra.mxu0 %v91
  %121 = vmatpush.msra.mxu0 %v90
  %122 = vmatpush.msra.mxu0 %v89
  %123 = vmatmul.f32.gmra.mxu0 %v88
  %v124 = vpop.f32.mrf.mxu0
  %v125 = vadd.f32 %v106, %v124
  %126 = vdwg.mxu0
  %128 = vrot.lane.b32.xlu0 %v125, 127
  %v129 = vpop.permute.xlu0 %128
  %vm131 = vcmask 15360
  %v132 = vsel %vm131, %v129, 0.0
  %133 = vadd.xlane.f32.xlu0 %v132
  %v134 = vpop.xlane.xlu0 %133
  %v135 = vrcp.pop 2.0
  %v136 = vmul.f32 2.0, %v135
  %v137 = vsub.f32 1.0, %v136
  %v138 = vmul.f32 %v135, %v137
  %v139 = vadd.f32 %v135, %v138
  %vm140 = vweird.f32 %v135
  %v141 = vsel %vm140, %v135, %v139
  %v142 = vmul.f32 %v134, %v141
  %v143 = vsub.f32 %v125, %v142
  %144 = vset.pattern.permute.xlu0 0
  %145 = vperm.xlu0 %144, %v125
  %v146 = vpop.permute.xlu0 %145
  %v148 = vadd.f32 %v146, %v143
  %150 = vrot.lane.b32.xlu0 %v148, 127
  %v151 = vpop.permute.xlu0 %150
  %153 = vst.msk [vmem:[%s4] sm:$0xff] %vm131, %v151
  // Predicated region
  $region18: #{dueling_dqn_forward.1} parent=0 // pred_check
    _
  $region19: #{dueling_dqn_forward.1} parent=0 // pred_check_branch
    %155 = sbr.rel (0) target = $region21
  $region20: #{dueling_dqn_forward.1} parent=0 // pred_region
    _
  $region21: #{dueling_dqn_forward.1} parent=0 // pred_fallthru
    _
  // Predicated region
  $region22: #{dueling_dqn_forward.1} parent=0 // pred_check
    _
  $region23: #{dueling_dqn_forward.1} parent=0 // pred_check_branch
    %157 = sbr.rel (0) target = $region25
  $region24: #{dueling_dqn_forward.1} parent=0 // pred_region
    _
  $region25: #{dueling_dqn_forward.1} parent=0 // pred_fallthru
    _

</llo_original>
